<compile_context>
chip_gen: v7x
topology: tpu7x:2x2x1
jax: 0.10.0
libtpu: 0.0.40
codegen_flags: <defaults>
</compile_context>

<pallas_src>
import jax
import jax.numpy as jnp
from jax.experimental import pallas as pl
from jax.experimental.pallas import tpu as pltpu


def dyt_kernel(alpha_ref, gamma_ref, beta_ref, x_ref, o_ref):
    # alpha_ref: SMEM (1,) f32
    # gamma_ref/beta_ref: VMEM (TR, 1) f32 per-row affine params
    # x_ref/o_ref: VMEM (TR, TL) block of the collapsed (N*C, H*W) array
    a = alpha_ref[0]
    x = x_ref[...].astype(jnp.float32)
    y = jnp.tanh(a * x) * gamma_ref[...] + beta_ref[...]
    o_ref[...] = y.astype(o_ref.dtype)


def _row_lane_tiles(rows, lanes, itemsize, target_bytes):
    # Lane tile: keep the full width unless a single 8-row slab already blows
    # the budget and the width is 128-tileable.
    if lanes % 128 == 0 and lanes * 8 * itemsize > target_bytes:
        tl = max(128, (target_bytes // (8 * itemsize)) // 128 * 128)
        tl = min(tl, lanes)
    else:
        tl = lanes
    # Row tile: a multiple of 8 (or the full row count when it is small),
    # sized so each block moves ~target_bytes.
    if rows <= 8:
        tr = rows
    else:
        tr = max(8, (target_bytes // (tl * itemsize)) // 8 * 8)
        tr = min(tr, rows)  # either a multiple of 8 or the full dim
    return tr, tl


def dyt_forward(x, alpha, gamma, beta, *, target_block_bytes=2 << 20):
    """x: (N, C, H, W); alpha: scalar (); gamma/beta: (1, C, 1, 1)."""
    N, C, H, W = x.shape
    R, L = N * C, H * W

    x2 = x.reshape(R, L)  # contiguous reshape — no data movement
    alpha_s = jnp.reshape(alpha, (1,)).astype(jnp.float32)
    gamma_rows = jnp.broadcast_to(
        jnp.reshape(gamma, (1, C)).astype(jnp.float32), (N, C)
    ).reshape(R, 1)
    beta_rows = jnp.broadcast_to(
        jnp.reshape(beta, (1, C)).astype(jnp.float32), (N, C)
    ).reshape(R, 1)

    tr, tl = _row_lane_tiles(
        R, L, jnp.dtype(x.dtype).itemsize, target_block_bytes
    )
    grid = (pl.cdiv(R, tr), pl.cdiv(L, tl))

    out2 = pl.pallas_call(
        dyt_kernel,
        out_shape=jax.ShapeDtypeStruct((R, L), x.dtype),
        grid_spec=pl.GridSpec(
            grid=grid,
            in_specs=[
                pl.BlockSpec(memory_space=pltpu.MemorySpace.SMEM),   # alpha
                pl.BlockSpec((tr, 1), lambda i, j: (i, 0)),          # gamma rows
                pl.BlockSpec((tr, 1), lambda i, j: (i, 0)),          # beta rows
                pl.BlockSpec((tr, tl), lambda i, j: (i, j)),         # x
            ],
            out_specs=pl.BlockSpec((tr, tl), lambda i, j: (i, j)),
        ),
        compiler_params=pltpu.CompilerParams(
            dimension_semantics=("parallel", "parallel"),
            vmem_limit_bytes=32 * 1024 * 1024,
        ),
    )(alpha_s, gamma_rows, beta_rows, x2)

    return out2.reshape(N, C, H, W)


def _ref(x, alpha, gamma, beta):
    return gamma * jnp.tanh(alpha * x) + beta


if __name__ == "__main__":
    key = jax.random.PRNGKey(0)
    k_x, k_g, k_b, k_x2 = jax.random.split(key, 4)

    # --- small shape consistent with the module ---
    N, C, H, W = 2, 4, 16, 16
    x = jax.random.normal(k_x, (N, C, H, W), dtype=jnp.float32)
    alpha = jnp.asarray(0.5, dtype=jnp.float32)
    gamma = jax.random.normal(k_g, (1, C, 1, 1), dtype=jnp.float32)
    beta = jax.random.normal(k_b, (1, C, 1, 1), dtype=jnp.float32)

    out = dyt_forward(x, alpha, gamma, beta)
    out = jax.block_until_ready(out)
    ref = _ref(x, alpha, gamma, beta)
    assert out.shape == (N, C, H, W)
    assert jnp.allclose(out, ref, atol=1e-6, rtol=1e-6)

    # --- moderate shape that exercises multi-block row tiling ---
    N2, C2, H2, W2 = 16, 16, 64, 64
    x2 = jax.random.normal(k_x2, (N2, C2, H2, W2), dtype=jnp.float32)
    gamma2 = jax.random.normal(k_g, (1, C2, 1, 1), dtype=jnp.float32)
    beta2 = jax.random.normal(k_b, (1, C2, 1, 1), dtype=jnp.float32)
    out2 = jax.block_until_ready(dyt_forward(x2, alpha, gamma2, beta2))
    ref2 = _ref(x2, alpha, gamma2, beta2)
    assert jnp.allclose(out2, ref2, atol=1e-5, rtol=1e-5)

    # --- bf16 activations: bf16 HBM traffic, f32 compute inside kernel ---
    x_bf = x.astype(jnp.bfloat16)
    out_bf = jax.block_until_ready(dyt_forward(x_bf, alpha, gamma, beta))
    ref_bf = _ref(x_bf.astype(jnp.float32), alpha, gamma, beta)
    assert out_bf.dtype == jnp.bfloat16
    assert jnp.allclose(
        out_bf.astype(jnp.float32), ref_bf, atol=5e-2, rtol=5e-2
    )

    print("KERNEL_OK")
</pallas_src>

<mosaic_0001>
module attributes {stable_mosaic.version = 11 : i64} {
  func.func @dyt_kernel(%arg0: i32, %arg1: i32, %arg2: memref<1xf32, #tpu.memory_space<smem>>, %arg3: memref<8x1xf32, #tpu.memory_space<vmem>>, %arg4: memref<8x1xf32, #tpu.memory_space<vmem>>, %arg5: memref<8x256xf32, #tpu.memory_space<vmem>>, %arg6: memref<8x256xf32, #tpu.memory_space<vmem>>) attributes {dimension_semantics = [#tpu.dimension_semantics<parallel>, #tpu.dimension_semantics<parallel>], iteration_bounds = array<i64: 1, 1>, scalar_prefetch = 0 : i64, scratch_operands = 0 : i64, tpu.core_type = #tpu.core_type<tc>, window_params = [{transform_indices = @transform_0, window_bounds = array<i64: 1>}, {transform_indices = @transform_1, window_bounds = array<i64: 8, 1>}, {transform_indices = @transform_2, window_bounds = array<i64: 8, 1>}, {transform_indices = @transform_3, window_bounds = array<i64: 8, 256>}, {transform_indices = @transform_4, window_bounds = array<i64: 8, 256>}]} {
    %c0 = arith.constant 0 : index
    %0 = memref.load %arg2[%c0] : memref<1xf32, #tpu.memory_space<smem>>
    %c0_0 = arith.constant 0 : index
    %c0_1 = arith.constant 0 : index
    %1 = vector.load %arg5[%c0_0, %c0_1] : memref<8x256xf32, #tpu.memory_space<vmem>>, vector<8x256xf32>
    %2 = vector.broadcast %0 : f32 to vector<8x256xf32>
    %3 = arith.mulf %2, %1 : vector<8x256xf32>
    %4 = math.tanh %3 : vector<8x256xf32>
    %c0_2 = arith.constant 0 : index
    %c0_3 = arith.constant 0 : index
    %5 = vector.load %arg3[%c0_2, %c0_3] : memref<8x1xf32, #tpu.memory_space<vmem>>, vector<8x1xf32>
    %6 = vector.broadcast %5 : vector<8x1xf32> to vector<8x256xf32>
    %7 = arith.mulf %4, %6 : vector<8x256xf32>
    %c0_4 = arith.constant 0 : index
    %c0_5 = arith.constant 0 : index
    %8 = vector.load %arg4[%c0_4, %c0_5] : memref<8x1xf32, #tpu.memory_space<vmem>>, vector<8x1xf32>
    %9 = vector.broadcast %8 : vector<8x1xf32> to vector<8x256xf32>
    %10 = arith.addf %7, %9 : vector<8x256xf32>
    %c0_6 = arith.constant 0 : index
    %c0_7 = arith.constant 0 : index
    %11 = vector.load %arg6[%c0_6, %c0_7] : memref<8x256xf32, #tpu.memory_space<vmem>>, vector<8x256xf32>
    tpu.vector_store %arg6[%c0_6, %c0_7], %10 {strides = array<i32>} : memref<8x256xf32, #tpu.memory_space<vmem>>, vector<8x256xf32>,
    return
  }
  func.func @transform_0(%arg0: i32, %arg1: i32) -> i32 {
    %c0_i32 = arith.constant 0 : i32
    %c0_i32_0 = arith.constant 0 : i32
    return %c0_i32 : i32
  }
  func.func @transform_1(%arg0: i32, %arg1: i32) -> (i32, i32) {
    %c0_i32 = arith.constant 0 : i32
    %c0_i32_0 = arith.constant 0 : i32
    return %arg0, %c0_i32 : i32, i32
  }
  func.func @transform_2(%arg0: i32, %arg1: i32) -> (i32, i32) {
    %c0_i32 = arith.constant 0 : i32
    %c0_i32_0 = arith.constant 0 : i32
    return %arg0, %c0_i32 : i32, i32
  }
  func.func @transform_3(%arg0: i32, %arg1: i32) -> (i32, i32) {
    %c0_i32 = arith.constant 0 : i32
    return %arg0, %arg1 : i32, i32
  }
  func.func @transform_4(%arg0: i32, %arg1: i32) -> (i32, i32) {
    %c0_i32 = arith.constant 0 : i32
    return %arg0, %arg1 : i32, i32
  }
}

</mosaic_0001>

<llo_original>
// kernel: tpu_custom_call.1
$region0: #{tpu_custom_call.1}
  #allocation0 [shape = 'u32[]', space=smem, size = 0x4, offset = 0x4, fixed_abs, tag = 'smem constant byte address 0x4 - core index']
  #allocation1 [shape = 'u32[144,128]{1,0:T(1,128)}', space=vmem, size = 0x12000, scoped, tag = 'internal scratch']
  #allocation2 [shape = 'f32[1]{0:T(128)S(6)}', space=smem, size = 0x200, scoped, tag = 'scoped memory for tpu_custom_call.1']
  %s0 = inlined_call_operand.<no memory space> [shape: f32[1], index: 0, kind: input, shape index: {}]
  %s1 = inlined_call_operand.vmem [shape: f32[8,1], index: 1, kind: input, shape index: {}]
  %s2 = inlined_call_operand.vmem [shape: f32[8,1], index: 2, kind: input, shape index: {}]
  %s3 = inlined_call_operand.vmem [shape: f32[8,256], index: 3, kind: input, shape index: {}]
  %s4 = inlined_call_operand.hbm [shape: f32[8,256], index: 4, kind: output, shape index: {}]
  %s5 = sld [smem:[#allocation0]]
  $region26: #{tpu_custom_call.1} parent=0
    _
  %s7 = ssub.s32 1, %s5
  %s8 = scalar_select 0, %s7, %s5
  %9 = sst [smem:[#allocation2]] %s0
  $region1: #{tpu_custom_call.1} parent=0
    #allocation3 [shape = 'u8[8192]{0}', space=vmem, size = 0x2000, scoped, tag = 'output window, operand 0, single buffered']
    #allocation4 [shape = 's32[1]{0}', space=sflag, size = 0x4, scoped, tag = 'scoped memory for tpu_custom_call.1']
    %10 = vsyncpa [#allocation4], 0
    // Predicated region
    $region2: #{tpu_custom_call.1} parent=1 // pred_check
      _
    $region3: #{tpu_custom_call.1} parent=1 // pred_check_branch
      %12 = sbr.rel (0) target = $region5
    $region4: #{tpu_custom_call.1} parent=1 // pred_region
      _
    $region5: #{tpu_custom_call.1} parent=1 // pred_fallthru
      _
    // Predicated region
    $region6: #{tpu_custom_call.1} parent=1 // pred_check
      _
    $region7: #{tpu_custom_call.1} parent=1 // pred_check_branch
      %14 = sbr.rel (0) target = $region9
    $region8: #{tpu_custom_call.1} parent=1 // pred_region
      _
    $region9: #{tpu_custom_call.1} parent=1 // pred_fallthru
      _
    // Predicated region
    $region10: #{tpu_custom_call.1} parent=1 // pred_check
      _
    $region11: #{tpu_custom_call.1} parent=1 // pred_check_branch
      %16 = sbr.rel (0) target = $region13
    $region12: #{tpu_custom_call.1} parent=1 // pred_region
      _
    $region13: #{tpu_custom_call.1} parent=1 // pred_fallthru
      _
    // Predicated region
    $region14: #{tpu_custom_call.1} parent=1 // pred_check
      _
    $region15: #{tpu_custom_call.1} parent=1 // pred_check_branch
      %18 = sbr.rel (0) target = $region17
    $region16: #{tpu_custom_call.1} parent=1 // pred_region
      _
    $region17: #{tpu_custom_call.1} parent=1 // pred_fallthru
      _
    %s19 = sld [smem:[#allocation2]]
    %v20 = vld [vmem:[%s3] sm:$0xff]
    %v21 = vld [vmem:[%s3 + $0x8] sm:$0xff]
    %v22 = vstv %s19
    %v23 = vmul.f32 %v22, %v20
    %v24 = vmul.f32 %v22, %v21
    %v25 = vtanh.pop %v23
    %v26 = vtanh.pop %v24
    %v27 = vld [vmem:[%s1] sm:$0xff]
    %29 = vset.pattern.permute.xlu0 0
    %30 = vperm.xlu0 %29, %v27
    %v31 = vpop.permute.xlu0 %30
    %v33 = vmul.f32 %v25, %v31
    %v34 = vmul.f32 %v26, %v31
    %v35 = vld [vmem:[%s2] sm:$0xff]
    %37 = vset.pattern.permute.xlu0 0
    %38 = vperm.xlu0 %37, %v35
    %v39 = vpop.permute.xlu0 %38
    %v41 = vadd.f32 %v33, %v39
    %v42 = vadd.f32 %v34, %v39
    %43 = vst [vmem:[#allocation3] sm:$0xff] %v41
    %44 = vst [vmem:[#allocation3 + $0x8] sm:$0xff] %v42
    // Predicated region
    $region18: #{tpu_custom_call.1} parent=1 // pred_check
      _
    $region19: #{tpu_custom_call.1} parent=1 // pred_check_branch
      %46 = sbr.rel (0) target = $region21
    $region20: #{tpu_custom_call.1} parent=1 // pred_region
      %s48 = ssub.s32 256, 256
      %49 = vsyncadd [#allocation4], %s48
      %s51 = sshll.u32 [#allocation3], 4
      %s52 = int_to_ptr.vmem [resolvable:$true] %s51
      %54 = dma.vmem_to_hbm [thread:$0]  %s52, 256, %s4, [#allocation4]
    $region21: #{tpu_custom_call.1} parent=1 // pred_fallthru
      _
    // Predicated region
    $region22: #{tpu_custom_call.1} parent=1 // pred_check
      _
    $region23: #{tpu_custom_call.1} parent=1 // pred_check_branch
      %56 = sbr.rel (0) target = $region25
    $region24: #{tpu_custom_call.1} parent=1 // pred_region
      %57 = dma.done [#allocation4], 256
    $region25: #{tpu_custom_call.1} parent=1 // pred_fallthru
      _
    %58 = vsyncpa [#allocation4], 1

</llo_original>
